<compile_context>
chip_gen: v5e
topology: v5e:2x2
jax: 0.10.0
libtpu: 0.0.40
codegen_flags: <defaults>
</compile_context>

<pallas_src>
import jax
import jax.numpy as jnp
from jax.experimental import pallas as pl
from jax.experimental.pallas import tpu as pltpu

KSIZE = 3
PAD = 1
C1 = (0.01 * 1.0) ** 2
C2 = (0.03 * 1.0) ** 2


def _ssim_kernel(x_ref, y_ref, o_ref):
    # x_ref / y_ref / o_ref: (B, H, W) float32 blocks (unpadded planes).
    x = x_ref[...]
    y = y_ref[...]
    H = x.shape[1]
    W = x.shape[2]
    inv9 = 1.0 / (KSIZE * KSIZE)

    # --- Vertical (sublane) reflected neighbors, shared by all pooled terms.
    # row i-1 (reflect at i=0 -> row 1) and row i+1 (reflect at i=H-1 -> row H-2)
    xu = jnp.concatenate([x[:, 1:2, :], x[:, :-1, :]], axis=1)
    xd = jnp.concatenate([x[:, 1:, :], x[:, H - 2:H - 1, :]], axis=1)
    yu = jnp.concatenate([y[:, 1:2, :], y[:, :-1, :]], axis=1)
    yd = jnp.concatenate([y[:, 1:, :], y[:, H - 2:H - 1, :]], axis=1)

    # Vertical 3-row reflected sums of x, y, x^2, y^2, x*y.
    vx = xu + x + xd
    vy = yu + y + yd
    vxx = xu * xu + x * x + xd * xd
    vyy = yu * yu + y * y + yd * yd
    vxy = xu * yu + x * y + xd * yd

    # --- Horizontal (lane) reflected 3-col sum.
    def hsum(a):
        left = jnp.concatenate([a[:, :, 1:2], a[:, :, :-1]], axis=2)
        right = jnp.concatenate([a[:, :, 1:], a[:, :, W - 2:W - 1]], axis=2)
        return left + a + right

    mu_x = hsum(vx) * inv9
    mu_y = hsum(vy) * inv9
    ex2 = hsum(vxx) * inv9
    ey2 = hsum(vyy) * inv9
    exy = hsum(vxy) * inv9

    sig_x = ex2 - mu_x * mu_x
    sig_y = ey2 - mu_y * mu_y
    sig_xy = exy - mu_x * mu_y

    n = (2.0 * mu_x * mu_y + C1) * (2.0 * sig_xy + C2)
    d = (mu_x * mu_x + mu_y * mu_y + C1) * (sig_x + sig_y + C2)

    # EUP approximate reciprocal + one Newton step -> ~f32 accuracy, no VPU divide.
    r = pl.reciprocal(d, approx=True)
    r = r * (2.0 - d * r)

    v = (1.0 - n * r) * 0.5
    o_ref[...] = jnp.clip(v, 0.0, 1.0)


def ssim_pallas(x, y):
    """x, y: (N, C, H, W) -> (N, C, H, W) float32 SSIM loss map."""
    N, C, H, W = x.shape
    assert H >= 2 and W >= 2, "ReflectionPad2d(1) requires H, W >= 2"
    NC = N * C

    x2 = x.reshape(NC, H, W).astype(jnp.float32)
    y2 = y.reshape(NC, H, W).astype(jnp.float32)

    # Batch B planes per grid step: target ~1 MiB of input per operand per step,
    # but keep at least 2 grid steps when NC >= 2 so v7x can use both TCs.
    plane_bytes = H * W * 4
    target_bytes = 1 << 20
    b = max(1, min(target_bytes // plane_bytes, pl.cdiv(NC, 2)))
    nc_pad = pl.cdiv(NC, b) * b
    if nc_pad != NC:
        # Zero planes are numerically safe (give v == 0) and sliced off below.
        pad = ((0, nc_pad - NC), (0, 0), (0, 0))
        x2 = jnp.pad(x2, pad)
        y2 = jnp.pad(y2, pad)

    out = pl.pallas_call(
        _ssim_kernel,
        out_shape=jax.ShapeDtypeStruct((nc_pad, H, W), jnp.float32),
        grid_spec=pltpu.PrefetchScalarGridSpec(
            num_scalar_prefetch=0,
            grid=(nc_pad // b,),
            in_specs=[
                pl.BlockSpec((b, H, W), lambda i: (i, 0, 0)),
                pl.BlockSpec((b, H, W), lambda i: (i, 0, 0)),
            ],
            out_specs=pl.BlockSpec((b, H, W), lambda i: (i, 0, 0)),
        ),
        compiler_params=pltpu.CompilerParams(
            dimension_semantics=("parallel",),
            vmem_limit_bytes=32 * 1024 * 1024,
        ),
    )(x2, y2)

    if nc_pad != NC:
        out = out[:NC]
    return out.reshape(N, C, H, W)


def ssim_ref(x, y):
    """Pure-JAX reference mirroring the PyTorch module."""
    xp = jnp.pad(x, ((0, 0), (0, 0), (PAD, PAD), (PAD, PAD)), mode="reflect")
    yp = jnp.pad(y, ((0, 0), (0, 0), (PAD, PAD), (PAD, PAD)), mode="reflect")

    def pool(a):
        _, _, Hp, Wp = a.shape
        H, W = Hp - 2 * PAD, Wp - 2 * PAD
        s = jnp.zeros(a.shape[:2] + (H, W), jnp.float32)
        for di in range(KSIZE):
            for dj in range(KSIZE):
                s = s + a[:, :, di:di + H, dj:dj + W]
        return s / (KSIZE * KSIZE)

    mu_x = pool(xp)
    mu_y = pool(yp)
    sig_x = pool(xp ** 2) - mu_x ** 2
    sig_y = pool(yp ** 2) - mu_y ** 2
    sig_xy = pool(xp * yp) - mu_x * mu_y
    n = (2 * mu_x * mu_y + C1) * (2 * sig_xy + C2)
    d = (mu_x ** 2 + mu_y ** 2 + C1) * (sig_x + sig_y + C2)
    return jnp.clip((1 - n / d) / 2, 0.0, 1.0)


if __name__ == "__main__":
    key = jax.random.PRNGKey(0)
    kx, ky = jax.random.split(key)
    N, C, H, W = 2, 4, 16, 16
    x = jax.random.uniform(kx, (N, C, H, W), dtype=jnp.float32)
    y = jax.random.uniform(ky, (N, C, H, W), dtype=jnp.float32)

    out = ssim_pallas(x, y)
    out = jax.block_until_ready(out)

    ref = ssim_ref(x.astype(jnp.float32), y.astype(jnp.float32))
    assert out.shape == (N, C, H, W)
    assert jnp.allclose(out, ref, atol=1e-5, rtol=1e-5), "mismatch vs reference"

    print("KERNEL_OK")
</pallas_src>

<mosaic_0001>
module attributes {stable_mosaic.version = 11 : i64} {
  func.func @_ssim_kernel(%arg0: i32, %arg1: memref<4x16x16xf32, #tpu.memory_space<vmem>>, %arg2: memref<4x16x16xf32, #tpu.memory_space<vmem>>, %arg3: memref<4x16x16xf32, #tpu.memory_space<vmem>>) attributes {dimension_semantics = [#tpu.dimension_semantics<parallel>], iteration_bounds = array<i64: 2>, scalar_prefetch = 0 : i64, scratch_operands = 0 : i64, tpu.core_type = #tpu.core_type<tc>, window_params = [{transform_indices = @transform_0, window_bounds = array<i64: 4, 16, 16>}, {transform_indices = @transform_1, window_bounds = array<i64: 4, 16, 16>}, {transform_indices = @transform_2, window_bounds = array<i64: 4, 16, 16>}]} {
    %c0 = arith.constant 0 : index
    %c0_0 = arith.constant 0 : index
    %c0_1 = arith.constant 0 : index
    %0 = vector.load %arg1[%c0, %c0_0, %c0_1] : memref<4x16x16xf32, #tpu.memory_space<vmem>>, vector<4x16x16xf32>
    %c0_2 = arith.constant 0 : index
    %c0_3 = arith.constant 0 : index
    %c0_4 = arith.constant 0 : index
    %1 = vector.load %arg2[%c0_2, %c0_3, %c0_4] : memref<4x16x16xf32, #tpu.memory_space<vmem>>, vector<4x16x16xf32>
    %2 = vector.extract_strided_slice %0 {offsets = [0, 1, 0], sizes = [4, 1, 16], strides = [1, 1, 1]} : vector<4x16x16xf32> to vector<4x1x16xf32>
    %3 = vector.extract_strided_slice %0 {offsets = [0, 0, 0], sizes = [4, 15, 16], strides = [1, 1, 1]} : vector<4x16x16xf32> to vector<4x15x16xf32>
    %4 = tpu.concatenate %2, %3 in 1 : vector<4x1x16xf32>, vector<4x15x16xf32> -> vector<4x16x16xf32>
    %5 = vector.extract_strided_slice %0 {offsets = [0, 1, 0], sizes = [4, 15, 16], strides = [1, 1, 1]} : vector<4x16x16xf32> to vector<4x15x16xf32>
    %6 = vector.extract_strided_slice %0 {offsets = [0, 14, 0], sizes = [4, 1, 16], strides = [1, 1, 1]} : vector<4x16x16xf32> to vector<4x1x16xf32>
    %7 = tpu.concatenate %5, %6 in 1 : vector<4x15x16xf32>, vector<4x1x16xf32> -> vector<4x16x16xf32>
    %8 = vector.extract_strided_slice %1 {offsets = [0, 1, 0], sizes = [4, 1, 16], strides = [1, 1, 1]} : vector<4x16x16xf32> to vector<4x1x16xf32>
    %9 = vector.extract_strided_slice %1 {offsets = [0, 0, 0], sizes = [4, 15, 16], strides = [1, 1, 1]} : vector<4x16x16xf32> to vector<4x15x16xf32>
    %10 = tpu.concatenate %8, %9 in 1 : vector<4x1x16xf32>, vector<4x15x16xf32> -> vector<4x16x16xf32>
    %11 = vector.extract_strided_slice %1 {offsets = [0, 1, 0], sizes = [4, 15, 16], strides = [1, 1, 1]} : vector<4x16x16xf32> to vector<4x15x16xf32>
    %12 = vector.extract_strided_slice %1 {offsets = [0, 14, 0], sizes = [4, 1, 16], strides = [1, 1, 1]} : vector<4x16x16xf32> to vector<4x1x16xf32>
    %13 = tpu.concatenate %11, %12 in 1 : vector<4x15x16xf32>, vector<4x1x16xf32> -> vector<4x16x16xf32>
    %14 = arith.addf %4, %0 : vector<4x16x16xf32>
    %15 = arith.addf %14, %7 : vector<4x16x16xf32>
    %16 = arith.addf %10, %1 : vector<4x16x16xf32>
    %17 = arith.addf %16, %13 : vector<4x16x16xf32>
    %18 = arith.mulf %4, %4 : vector<4x16x16xf32>
    %19 = arith.mulf %0, %0 : vector<4x16x16xf32>
    %20 = arith.addf %18, %19 : vector<4x16x16xf32>
    %21 = arith.mulf %7, %7 : vector<4x16x16xf32>
    %22 = arith.addf %20, %21 : vector<4x16x16xf32>
    %23 = arith.mulf %10, %10 : vector<4x16x16xf32>
    %24 = arith.mulf %1, %1 : vector<4x16x16xf32>
    %25 = arith.addf %23, %24 : vector<4x16x16xf32>
    %26 = arith.mulf %13, %13 : vector<4x16x16xf32>
    %27 = arith.addf %25, %26 : vector<4x16x16xf32>
    %28 = arith.mulf %4, %10 : vector<4x16x16xf32>
    %29 = arith.mulf %0, %1 : vector<4x16x16xf32>
    %30 = arith.addf %28, %29 : vector<4x16x16xf32>
    %31 = arith.mulf %7, %13 : vector<4x16x16xf32>
    %32 = arith.addf %30, %31 : vector<4x16x16xf32>
    %33 = vector.extract_strided_slice %15 {offsets = [0, 0, 1], sizes = [4, 16, 1], strides = [1, 1, 1]} : vector<4x16x16xf32> to vector<4x16x1xf32>
    %34 = vector.extract_strided_slice %15 {offsets = [0, 0, 0], sizes = [4, 16, 15], strides = [1, 1, 1]} : vector<4x16x16xf32> to vector<4x16x15xf32>
    %35 = tpu.concatenate %33, %34 in 2 : vector<4x16x1xf32>, vector<4x16x15xf32> -> vector<4x16x16xf32>
    %36 = vector.extract_strided_slice %15 {offsets = [0, 0, 1], sizes = [4, 16, 15], strides = [1, 1, 1]} : vector<4x16x16xf32> to vector<4x16x15xf32>
    %37 = vector.extract_strided_slice %15 {offsets = [0, 0, 14], sizes = [4, 16, 1], strides = [1, 1, 1]} : vector<4x16x16xf32> to vector<4x16x1xf32>
    %38 = tpu.concatenate %36, %37 in 2 : vector<4x16x15xf32>, vector<4x16x1xf32> -> vector<4x16x16xf32>
    %39 = arith.addf %35, %15 : vector<4x16x16xf32>
    %40 = arith.addf %39, %38 : vector<4x16x16xf32>
    %cst = arith.constant 0.111111112 : f32
    %41 = vector.broadcast %cst : f32 to vector<4x16x16xf32>
    %42 = arith.mulf %40, %41 : vector<4x16x16xf32>
    %43 = vector.extract_strided_slice %17 {offsets = [0, 0, 1], sizes = [4, 16, 1], strides = [1, 1, 1]} : vector<4x16x16xf32> to vector<4x16x1xf32>
    %44 = vector.extract_strided_slice %17 {offsets = [0, 0, 0], sizes = [4, 16, 15], strides = [1, 1, 1]} : vector<4x16x16xf32> to vector<4x16x15xf32>
    %45 = tpu.concatenate %43, %44 in 2 : vector<4x16x1xf32>, vector<4x16x15xf32> -> vector<4x16x16xf32>
    %46 = vector.extract_strided_slice %17 {offsets = [0, 0, 1], sizes = [4, 16, 15], strides = [1, 1, 1]} : vector<4x16x16xf32> to vector<4x16x15xf32>
    %47 = vector.extract_strided_slice %17 {offsets = [0, 0, 14], sizes = [4, 16, 1], strides = [1, 1, 1]} : vector<4x16x16xf32> to vector<4x16x1xf32>
    %48 = tpu.concatenate %46, %47 in 2 : vector<4x16x15xf32>, vector<4x16x1xf32> -> vector<4x16x16xf32>
    %49 = arith.addf %45, %17 : vector<4x16x16xf32>
    %50 = arith.addf %49, %48 : vector<4x16x16xf32>
    %cst_5 = arith.constant 0.111111112 : f32
    %51 = vector.broadcast %cst_5 : f32 to vector<4x16x16xf32>
    %52 = arith.mulf %50, %51 : vector<4x16x16xf32>
    %53 = vector.extract_strided_slice %22 {offsets = [0, 0, 1], sizes = [4, 16, 1], strides = [1, 1, 1]} : vector<4x16x16xf32> to vector<4x16x1xf32>
    %54 = vector.extract_strided_slice %22 {offsets = [0, 0, 0], sizes = [4, 16, 15], strides = [1, 1, 1]} : vector<4x16x16xf32> to vector<4x16x15xf32>
    %55 = tpu.concatenate %53, %54 in 2 : vector<4x16x1xf32>, vector<4x16x15xf32> -> vector<4x16x16xf32>
    %56 = vector.extract_strided_slice %22 {offsets = [0, 0, 1], sizes = [4, 16, 15], strides = [1, 1, 1]} : vector<4x16x16xf32> to vector<4x16x15xf32>
    %57 = vector.extract_strided_slice %22 {offsets = [0, 0, 14], sizes = [4, 16, 1], strides = [1, 1, 1]} : vector<4x16x16xf32> to vector<4x16x1xf32>
    %58 = tpu.concatenate %56, %57 in 2 : vector<4x16x15xf32>, vector<4x16x1xf32> -> vector<4x16x16xf32>
    %59 = arith.addf %55, %22 : vector<4x16x16xf32>
    %60 = arith.addf %59, %58 : vector<4x16x16xf32>
    %cst_6 = arith.constant 0.111111112 : f32
    %61 = vector.broadcast %cst_6 : f32 to vector<4x16x16xf32>
    %62 = arith.mulf %60, %61 : vector<4x16x16xf32>
    %63 = vector.extract_strided_slice %27 {offsets = [0, 0, 1], sizes = [4, 16, 1], strides = [1, 1, 1]} : vector<4x16x16xf32> to vector<4x16x1xf32>
    %64 = vector.extract_strided_slice %27 {offsets = [0, 0, 0], sizes = [4, 16, 15], strides = [1, 1, 1]} : vector<4x16x16xf32> to vector<4x16x15xf32>
    %65 = tpu.concatenate %63, %64 in 2 : vector<4x16x1xf32>, vector<4x16x15xf32> -> vector<4x16x16xf32>
    %66 = vector.extract_strided_slice %27 {offsets = [0, 0, 1], sizes = [4, 16, 15], strides = [1, 1, 1]} : vector<4x16x16xf32> to vector<4x16x15xf32>
    %67 = vector.extract_strided_slice %27 {offsets = [0, 0, 14], sizes = [4, 16, 1], strides = [1, 1, 1]} : vector<4x16x16xf32> to vector<4x16x1xf32>
    %68 = tpu.concatenate %66, %67 in 2 : vector<4x16x15xf32>, vector<4x16x1xf32> -> vector<4x16x16xf32>
    %69 = arith.addf %65, %27 : vector<4x16x16xf32>
    %70 = arith.addf %69, %68 : vector<4x16x16xf32>
    %cst_7 = arith.constant 0.111111112 : f32
    %71 = vector.broadcast %cst_7 : f32 to vector<4x16x16xf32>
    %72 = arith.mulf %70, %71 : vector<4x16x16xf32>
    %73 = vector.extract_strided_slice %32 {offsets = [0, 0, 1], sizes = [4, 16, 1], strides = [1, 1, 1]} : vector<4x16x16xf32> to vector<4x16x1xf32>
    %74 = vector.extract_strided_slice %32 {offsets = [0, 0, 0], sizes = [4, 16, 15], strides = [1, 1, 1]} : vector<4x16x16xf32> to vector<4x16x15xf32>
    %75 = tpu.concatenate %73, %74 in 2 : vector<4x16x1xf32>, vector<4x16x15xf32> -> vector<4x16x16xf32>
    %76 = vector.extract_strided_slice %32 {offsets = [0, 0, 1], sizes = [4, 16, 15], strides = [1, 1, 1]} : vector<4x16x16xf32> to vector<4x16x15xf32>
    %77 = vector.extract_strided_slice %32 {offsets = [0, 0, 14], sizes = [4, 16, 1], strides = [1, 1, 1]} : vector<4x16x16xf32> to vector<4x16x1xf32>
    %78 = tpu.concatenate %76, %77 in 2 : vector<4x16x15xf32>, vector<4x16x1xf32> -> vector<4x16x16xf32>
    %79 = arith.addf %75, %32 : vector<4x16x16xf32>
    %80 = arith.addf %79, %78 : vector<4x16x16xf32>
    %cst_8 = arith.constant 0.111111112 : f32
    %81 = vector.broadcast %cst_8 : f32 to vector<4x16x16xf32>
    %82 = arith.mulf %80, %81 : vector<4x16x16xf32>
    %83 = arith.mulf %42, %42 : vector<4x16x16xf32>
    %84 = arith.subf %62, %83 : vector<4x16x16xf32>
    %85 = arith.mulf %52, %52 : vector<4x16x16xf32>
    %86 = arith.subf %72, %85 : vector<4x16x16xf32>
    %87 = arith.mulf %42, %52 : vector<4x16x16xf32>
    %88 = arith.subf %82, %87 : vector<4x16x16xf32>
    %cst_9 = arith.constant 2.000000e+00 : f32
    %89 = vector.broadcast %cst_9 : f32 to vector<4x16x16xf32>
    %90 = arith.mulf %89, %42 : vector<4x16x16xf32>
    %91 = arith.mulf %90, %52 : vector<4x16x16xf32>
    %cst_10 = arith.constant 9.99999974E-5 : f32
    %92 = vector.broadcast %cst_10 : f32 to vector<4x16x16xf32>
    %93 = arith.addf %91, %92 : vector<4x16x16xf32>
    %cst_11 = arith.constant 2.000000e+00 : f32
    %94 = vector.broadcast %cst_11 : f32 to vector<4x16x16xf32>
    %95 = arith.mulf %94, %88 : vector<4x16x16xf32>
    %cst_12 = arith.constant 8.99999984E-4 : f32
    %96 = vector.broadcast %cst_12 : f32 to vector<4x16x16xf32>
    %97 = arith.addf %95, %96 : vector<4x16x16xf32>
    %98 = arith.mulf %93, %97 : vector<4x16x16xf32>
    %99 = arith.mulf %42, %42 : vector<4x16x16xf32>
    %100 = arith.mulf %52, %52 : vector<4x16x16xf32>
    %101 = arith.addf %99, %100 : vector<4x16x16xf32>
    %cst_13 = arith.constant 9.99999974E-5 : f32
    %102 = vector.broadcast %cst_13 : f32 to vector<4x16x16xf32>
    %103 = arith.addf %101, %102 : vector<4x16x16xf32>
    %104 = arith.addf %84, %86 : vector<4x16x16xf32>
    %cst_14 = arith.constant 8.99999984E-4 : f32
    %105 = vector.broadcast %cst_14 : f32 to vector<4x16x16xf32>
    %106 = arith.addf %104, %105 : vector<4x16x16xf32>
    %107 = arith.mulf %103, %106 : vector<4x16x16xf32>
    %108 = tpu.reciprocal %107 {approx = true} : vector<4x16x16xf32> -> vector<4x16x16xf32>
    %109 = arith.mulf %107, %108 : vector<4x16x16xf32>
    %cst_15 = arith.constant 2.000000e+00 : f32
    %110 = vector.broadcast %cst_15 : f32 to vector<4x16x16xf32>
    %111 = arith.subf %110, %109 : vector<4x16x16xf32>
    %112 = arith.mulf %108, %111 : vector<4x16x16xf32>
    %113 = arith.mulf %98, %112 : vector<4x16x16xf32>
    %cst_16 = arith.constant 1.000000e+00 : f32
    %114 = vector.broadcast %cst_16 : f32 to vector<4x16x16xf32>
    %115 = arith.subf %114, %113 : vector<4x16x16xf32>
    %cst_17 = arith.constant 5.000000e-01 : f32
    %116 = vector.broadcast %cst_17 : f32 to vector<4x16x16xf32>
    %117 = arith.mulf %115, %116 : vector<4x16x16xf32>
    %cst_18 = arith.constant 0.000000e+00 : f32
    %cst_19 = arith.constant 1.000000e+00 : f32
    %118 = vector.broadcast %cst_18 : f32 to vector<4x16x16xf32>
    %119 = arith.maximumf %118, %117 : vector<4x16x16xf32>
    %120 = vector.broadcast %cst_19 : f32 to vector<4x16x16xf32>
    %121 = arith.minimumf %120, %119 : vector<4x16x16xf32>
    %c0_20 = arith.constant 0 : index
    %c0_21 = arith.constant 0 : index
    %c0_22 = arith.constant 0 : index
    %122 = vector.load %arg3[%c0_20, %c0_21, %c0_22] : memref<4x16x16xf32, #tpu.memory_space<vmem>>, vector<4x16x16xf32>
    tpu.vector_store %arg3[%c0_20, %c0_21, %c0_22], %121 {strides = array<i32>} : memref<4x16x16xf32, #tpu.memory_space<vmem>>, vector<4x16x16xf32>,
    return
  }
  func.func @transform_0(%arg0: i32) -> (i32, i32, i32) {
    %c0_i32 = arith.constant 0 : i32
    %c0_i32_0 = arith.constant 0 : i32
    %c0_i32_1 = arith.constant 0 : i32
    return %arg0, %c0_i32, %c0_i32_0 : i32, i32, i32
  }
  func.func @transform_1(%arg0: i32) -> (i32, i32, i32) {
    %c0_i32 = arith.constant 0 : i32
    %c0_i32_0 = arith.constant 0 : i32
    %c0_i32_1 = arith.constant 0 : i32
    return %arg0, %c0_i32, %c0_i32_0 : i32, i32, i32
  }
  func.func @transform_2(%arg0: i32) -> (i32, i32, i32) {
    %c0_i32 = arith.constant 0 : i32
    %c0_i32_0 = arith.constant 0 : i32
    %c0_i32_1 = arith.constant 0 : i32
    return %arg0, %c0_i32, %c0_i32_0 : i32, i32, i32
  }
}

</mosaic_0001>

<llo_original>
// kernel: tpu_custom_call.1
$region0: #{tpu_custom_call.1}
  #allocation0 [shape = 'u32[]', space=smem, size = 0x4, offset = 0x4, fixed_abs, tag = 'smem constant byte address 0x4 - core index']
  #allocation1 [shape = 'u32[72,128]{1,0:T(1,128)}', space=vmem, size = 0x9000, scoped, tag = 'internal scratch']
  %s0 = inlined_call_operand.hbm [shape: f32[8,16,16], index: 0, kind: input, shape index: {}]
  %s1 = inlined_call_operand.hbm [shape: f32[8,16,16], index: 1, kind: input, shape index: {}]
  %s2 = inlined_call_operand.hbm [shape: f32[8,16,16], index: 2, kind: output, shape index: {}]
  %s3 = sld [smem:[#allocation0]]
  $region49: #{tpu_custom_call.1} parent=0
    _
  %s5 = ssub.s32 1, %s3
  %s6 = scalar_select 0, %s5, %s3
  $region1: #{tpu_custom_call.1} parent=0
    #allocation2 [shape = 'u8[65536]{0}', space=vmem, size = 0x10000, scoped, tag = 'input window, operand 0']
    #allocation3 [shape = 's32[2]{0}', space=sflag, size = 0x8, scoped, tag = 'scoped memory for tpu_custom_call.1']
    #allocation4 [shape = 's32[2]{0}', space=sflag, size = 0x8, scoped, tag = 'scoped memory for tpu_custom_call.1']
    #allocation5 [shape = 'u8[65536]{0}', space=vmem, size = 0x10000, scoped, tag = 'input window, operand 1']
    #allocation6 [shape = 's32[2]{0}', space=sflag, size = 0x8, scoped, tag = 'scoped memory for tpu_custom_call.1']
    #allocation7 [shape = 'u8[65536]{0}', space=vmem, size = 0x10000, scoped, tag = 'output window, operand 0']
    %7 = vsyncpa [#allocation3], 0
    %s8 = scalar_lea.sflag [#allocation3], 1
    %9 = vsyncpa %s8, 0
    %10 = vsyncpa [#allocation6], 0
    %s11 = scalar_lea.sflag [#allocation6], 1
    %12 = vsyncpa %s11, 0
    %13 = vsyncpa [#allocation4], 0
    %s14 = scalar_lea.sflag [#allocation4], 1
    %15 = vsyncpa %s14, 0
    loop: start=0, step=1, limit=4
    $region2: #{tpu_custom_call.1} parent=1 // loop_pre_header
      _
    $region3: #{tpu_custom_call.1} parent=1 // loop_header
      %s17 = sphi 0, %s21
      %p18 = scmp.ge.s32.totalorder %s17, 4
      %s27 = sphi 0, %s29
      %s30 = sphi 0, %s27
      %s31 = sphi 0, %s30
      %s47 = sphi 0, %s31
      %s53 = sphi 0, %s55
      %s56 = sphi 0, %s53
      %s57 = sphi 0, %s56
      %s73 = sphi 0, %s57
      %s79 = sphi 0, %s81
      %s82 = sphi 0, %s79
      %s83 = sphi 0, %s82
      %s99 = sphi 0, %s83
    $region4: #{tpu_custom_call.1} parent=1 // loop_header_branch
      %20 = sbr.rel (%p18) target = $region8
    $region5: #{tpu_custom_call.1} parent=1 // loop_body
      %s22 = ssub.s32 %s17, 1
      %s23 = ssub.s32 %s17, 2
      %s24 = sadd.s32 %s17, 1
      %s25 = ssub.s32 %s17, %s24
      %p26 = scmp.eq.s32.totalorder %s25, 0
      %s28 = sadd.s32 %s27, 1
      %s29 = scalar_select %p26, %s27, %s28
      %p32 = pneg %p26
      %p33 = scmp.eq.s32.totalorder %s17, 1
      %p34 = por %p32, %p33
      %p35 = scmp.ne.s32.totalorder %s27, %s30
      %p36 = scmp.eq.s32.totalorder %s17, 0
      %p37 = por %p35, %p36
      %p38 = scmp.ne.s32.totalorder %s27, %s30
      %p39 = scmp.eq.s32.totalorder %s22, 1
      %p40 = por %p38, %p39
      %p41 = scmp.ne.s32.totalorder %s30, %s31
      %p42 = scmp.eq.s32.totalorder %s22, 0
      %p43 = por %p41, %p42
      %p44 = scmp.ne.s32.totalorder %s30, %s31
      %p45 = scmp.eq.s32.totalorder %s23, 1
      %p46 = por %p44, %p45
      %p48 = scmp.ne.s32.totalorder %s31, %s47
      %p49 = scmp.eq.s32.totalorder %s23, 0
      %p50 = por %p48, %p49
      %s51 = ssub.s32 %s17, %s24
      %p52 = scmp.eq.s32.totalorder %s51, 0
      %s54 = sadd.s32 %s53, 1
      %s55 = scalar_select %p52, %s53, %s54
      %p58 = pneg %p52
      %p59 = scmp.eq.s32.totalorder %s17, 1
      %p60 = por %p58, %p59
      %p61 = scmp.ne.s32.totalorder %s53, %s56
      %p62 = scmp.eq.s32.totalorder %s17, 0
      %p63 = por %p61, %p62
      %p64 = scmp.ne.s32.totalorder %s53, %s56
      %p65 = scmp.eq.s32.totalorder %s22, 1
      %p66 = por %p64, %p65
      %p67 = scmp.ne.s32.totalorder %s56, %s57
      %p68 = scmp.eq.s32.totalorder %s22, 0
      %p69 = por %p67, %p68
      %p70 = scmp.ne.s32.totalorder %s56, %s57
      %p71 = scmp.eq.s32.totalorder %s23, 1
      %p72 = por %p70, %p71
      %p74 = scmp.ne.s32.totalorder %s57, %s73
      %p75 = scmp.eq.s32.totalorder %s23, 0
      %p76 = por %p74, %p75
      %s77 = ssub.s32 %s17, %s24
      %p78 = scmp.eq.s32.totalorder %s77, 0
      %s80 = sadd.s32 %s79, 1
      %s81 = scalar_select %p78, %s79, %s80
      %p84 = pneg %p78
      %p85 = scmp.eq.s32.totalorder %s17, 1
      %p86 = por %p84, %p85
      %p87 = scmp.ne.s32.totalorder %s79, %s82
      %p88 = scmp.eq.s32.totalorder %s17, 0
      %p89 = por %p87, %p88
      %p90 = scmp.ne.s32.totalorder %s79, %s82
      %p91 = scmp.eq.s32.totalorder %s22, 1
      %p92 = por %p90, %p91
      %p93 = scmp.ne.s32.totalorder %s82, %s83
      %p94 = scmp.eq.s32.totalorder %s22, 0
      %p95 = por %p93, %p94
      %p96 = scmp.ne.s32.totalorder %s82, %s83
      %p97 = scmp.eq.s32.totalorder %s23, 1
      %p98 = por %p96, %p97
      %p100 = scmp.ne.s32.totalorder %s83, %s99
      %p101 = scmp.eq.s32.totalorder %s23, 0
      %p102 = por %p100, %p101
      %p103 = scmp.le.s32.totalorder 1, %s17
      %p104 = scmp.lt.s32.totalorder %s17, 3
      %p105 = pnand %p103, %p104
      %p106 = pneg %p105
      // Predicated region
      $region9: #{tpu_custom_call.1} parent=5 // pred_check
        _
      $region10: #{tpu_custom_call.1} parent=5 // pred_check_branch
        %108 = sbr.rel (%p105) target = $region12
      $region11: #{tpu_custom_call.1} parent=5 // pred_region
        %s109 = ssub.s32 %s17, 1
      $region12: #{tpu_custom_call.1} parent=5 // pred_fallthru
        _
      %p110 = scmp.lt.s32.totalorder %s17, 2
      // Predicated region
      $region13: #{tpu_custom_call.1} parent=5 // pred_check
        %p111 = pneg %p110
      $region14: #{tpu_custom_call.1} parent=5 // pred_check_branch
        %113 = sbr.rel (%p111) target = $region16
      $region15: #{tpu_custom_call.1} parent=5 // pred_region
        // Predicated region
        $region17: #{tpu_custom_call.1} parent=15 // pred_check
          %p114 = pneg %p37
        $region18: #{tpu_custom_call.1} parent=15 // pred_check_branch
          %116 = sbr.rel (%p114) target = $region20
        $region19: #{tpu_custom_call.1} parent=15 // pred_region
          %s117 = sand.u32 %s27, 1
          %s118 = scalar_lea.sflag [#allocation3], %s117
          %s119 = sand.u32 %s27, 1
          %s120 = smul.addr %s119, 64
          %s121 = scalar_lea.vmem [#allocation2], %s120
          %s122 = smul.u32 4, %s17
          %124 = vsyncadd %s118, 0
          %s125 = smul.addr %s122, 2
          %s126 = smul.addr %s125, 8
          %s127 = scalar_lea.hbm %s0, %s126
          %s128 = sshll.u32 %s127, 4
          %s129 = int_to_ptr.hbm [resolvable:$true] %s128
          %s130 = sshll.u32 %s121, 4
          %s131 = int_to_ptr.vmem [resolvable:$true] %s130
          %136 = dma.hbm_to_vmem [thread:$0]  %s129, 1024, %s131, %s118, 128, 128, 8
        $region20: #{tpu_custom_call.1} parent=15 // pred_fallthru
          _
        // Predicated region
        $region21: #{tpu_custom_call.1} parent=15 // pred_check
          %p137 = pneg %p63
        $region22: #{tpu_custom_call.1} parent=15 // pred_check_branch
          %139 = sbr.rel (%p137) target = $region24
        $region23: #{tpu_custom_call.1} parent=15 // pred_region
          %s140 = sand.u32 %s53, 1
          %s141 = scalar_lea.sflag [#allocation6], %s140
          %s142 = sand.u32 %s53, 1
          %s143 = smul.addr %s142, 64
          %s144 = scalar_lea.vmem [#allocation5], %s143
          %s145 = smul.u32 4, %s17
          %147 = vsyncadd %s141, 0
          %s148 = smul.addr %s145, 2
          %s149 = smul.addr %s148, 8
          %s150 = scalar_lea.hbm %s1, %s149
          %s151 = sshll.u32 %s150, 4
          %s152 = int_to_ptr.hbm [resolvable:$true] %s151
          %s153 = sshll.u32 %s144, 4
          %s154 = int_to_ptr.vmem [resolvable:$true] %s153
          %159 = dma.hbm_to_vmem [thread:$0]  %s152, 1024, %s154, %s141, 128, 128, 8
        $region24: #{tpu_custom_call.1} parent=15 // pred_fallthru
          _
      $region16: #{tpu_custom_call.1} parent=5 // pred_fallthru
        _
      %p160 = scmp.le.s32.totalorder 1, %s17
      %p161 = scmp.lt.s32.totalorder %s17, 3
      %p162 = pnand %p160, %p161
      %p163 = pneg %p162
      // Predicated region
      $region25: #{tpu_custom_call.1} parent=5 // pred_check
        _
      $region26: #{tpu_custom_call.1} parent=5 // pred_check_branch
        %165 = sbr.rel (%p162) target = $region28
      $region27: #{tpu_custom_call.1} parent=5 // pred_region
        %s166 = ssub.s32 %s17, 1
        %s167 = sand.u32 %s30, 1
        %s168 = scalar_lea.sflag [#allocation3], %s167
        %s169 = sand.u32 %s30, 1
        %s170 = smul.addr %s169, 64
        %s171 = scalar_lea.vmem [#allocation2], %s170
        // Predicated region
        $region29: #{tpu_custom_call.1} parent=27 // pred_check
          %p172 = pneg %p43
        $region30: #{tpu_custom_call.1} parent=27 // pred_check_branch
          %174 = sbr.rel (%p172) target = $region32
        $region31: #{tpu_custom_call.1} parent=27 // pred_region
          %176 = dma.done %s168, 1024
        $region32: #{tpu_custom_call.1} parent=27 // pred_fallthru
          _
        %s177 = sand.u32 %s56, 1
        %s178 = scalar_lea.sflag [#allocation6], %s177
        %s179 = sand.u32 %s56, 1
        %s180 = smul.addr %s179, 64
        %s181 = scalar_lea.vmem [#allocation5], %s180
        // Predicated region
        $region33: #{tpu_custom_call.1} parent=27 // pred_check
          %p182 = pneg %p69
        $region34: #{tpu_custom_call.1} parent=27 // pred_check_branch
          %184 = sbr.rel (%p182) target = $region36
        $region35: #{tpu_custom_call.1} parent=27 // pred_region
          %186 = dma.done %s178, 1024
        $region36: #{tpu_custom_call.1} parent=27 // pred_fallthru
          _
        %s187 = sand.u32 %s30, 1
        %s188 = scalar_lea.sflag [#allocation3], %s187
        %s189 = sand.u32 %s30, 1
        %s190 = smul.addr %s189, 64
        %s191 = scalar_lea.vmem [#allocation2], %s190
        %p192 = pneg %p43
        %p193 = pneg %p40
        %s194 = sand.u32 %s56, 1
        %s195 = scalar_lea.sflag [#allocation6], %s194
        %s196 = sand.u32 %s56, 1
        %s197 = smul.addr %s196, 64
        %s198 = scalar_lea.vmem [#allocation5], %s197
        %p199 = pneg %p69
        %p200 = pneg %p66
        %p201 = pneg %p95
        %p202 = pneg %p92
        %s203 = sand.u32 %s82, 1
        %s204 = scalar_lea.sflag [#allocation4], %s203
        %s205 = sand.u32 %s82, 1
        %s206 = smul.addr %s205, 64
        %s207 = scalar_lea.vmem [#allocation7], %s206
        %s208 = smul.u32 4, %s22
        %s209 = smul.u32 4, %s22
        %s210 = smul.u32 4, %s22
        %v211 = vld [vmem:[%s171] sm:$0xff]
        %v212 = vld [vmem:[%s171 + $0x8] sm:$0xff]
        %v213 = vld [vmem:[%s171 + $0x10] sm:$0xff]
        %v214 = vld [vmem:[%s171 + $0x18] sm:$0xff]
        %v215 = vld [vmem:[%s171 + $0x20] sm:$0xff]
        %v216 = vld [vmem:[%s171 + $0x28] sm:$0xff]
        %v217 = vld [vmem:[%s171 + $0x30] sm:$0xff]
        %v218 = vld [vmem:[%s171 + $0x38] sm:$0xff]
        %v219 = vld [vmem:[%s181] sm:$0xff]
        %v220 = vld [vmem:[%s181 + $0x8] sm:$0xff]
        %v221 = vld [vmem:[%s181 + $0x10] sm:$0xff]
        %v222 = vld [vmem:[%s181 + $0x18] sm:$0xff]
        %v223 = vld [vmem:[%s181 + $0x20] sm:$0xff]
        %v224 = vld [vmem:[%s181 + $0x28] sm:$0xff]
        %v225 = vld [vmem:[%s181 + $0x30] sm:$0xff]
        %v226 = vld [vmem:[%s181 + $0x38] sm:$0xff]
        %v231 = vrot.slane %v211, 1
        %v232 = vrot.slane %v213, 1
        %v233 = vrot.slane %v215, 1
        %v234 = vrot.slane %v217, 1
        %vm243 = vcmask 1040384
        %v244 = vrot.slane %v211, 7
        %v245 = vrot.slane %v212, 7
        %v246 = vsel %vm243, %v244, %v245
        %v247 = vrot.slane %v213, 7
        %v248 = vrot.slane %v214, 7
        %v249 = vsel %vm243, %v247, %v248
        %v250 = vrot.slane %v215, 7
        %v251 = vrot.slane %v216, 7
        %v252 = vsel %vm243, %v250, %v251
        %v253 = vrot.slane %v217, 7
        %v254 = vrot.slane %v218, 7
        %v255 = vsel %vm243, %v253, %v254
        %v264 = vsel %vm243, %v231, %v244
        %v265 = vsel %vm243, %v232, %v247
        %v266 = vsel %vm243, %v233, %v250
        %v267 = vsel %vm243, %v234, %v253
        %vm268 = vcmask 1046528
        %v269 = vrot.slane %v212, 1
        %v270 = vsel %vm268, %v231, %v269
        %v271 = vrot.slane %v214, 1
        %v272 = vsel %vm268, %v232, %v271
        %v273 = vrot.slane %v216, 1
        %v274 = vsel %vm268, %v233, %v273
        %v275 = vrot.slane %v218, 1
        %v276 = vsel %vm268, %v234, %v275
        %v289 = vsel %vm268, %v269, %v245
        %v290 = vsel %vm268, %v271, %v248
        %v291 = vsel %vm268, %v273, %v251
        %v292 = vsel %vm268, %v275, %v254
        %v297 = vrot.slane %v219, 1
        %v298 = vrot.slane %v221, 1
        %v299 = vrot.slane %v223, 1
        %v300 = vrot.slane %v225, 1
        %v309 = vrot.slane %v219, 7
        %v310 = vrot.slane %v220, 7
        %v311 = vsel %vm243, %v309, %v310
        %v312 = vrot.slane %v221, 7
        %v313 = vrot.slane %v222, 7
        %v314 = vsel %vm243, %v312, %v313
        %v315 = vrot.slane %v223, 7
        %v316 = vrot.slane %v224, 7
        %v317 = vsel %vm243, %v315, %v316
        %v318 = vrot.slane %v225, 7
        %v319 = vrot.slane %v226, 7
        %v320 = vsel %vm243, %v318, %v319
        %v329 = vsel %vm243, %v297, %v309
        %v330 = vsel %vm243, %v298, %v312
        %v331 = vsel %vm243, %v299, %v315
        %v332 = vsel %vm243, %v300, %v318
        %v333 = vrot.slane %v220, 1
        %v334 = vsel %vm268, %v297, %v333
        %v335 = vrot.slane %v222, 1
        %v336 = vsel %vm268, %v298, %v335
        %v337 = vrot.slane %v224, 1
        %v338 = vsel %vm268, %v299, %v337
        %v339 = vrot.slane %v226, 1
        %v340 = vsel %vm268, %v300, %v339
        %v353 = vsel %vm268, %v333, %v310
        %v354 = vsel %vm268, %v335, %v313
        %v355 = vsel %vm268, %v337, %v316
        %v356 = vsel %vm268, %v339, %v319
        %v357 = vadd.f32 %v264, %v211
        %v358 = vadd.f32 %v246, %v212
        %v359 = vadd.f32 %v265, %v213
        %v360 = vadd.f32 %v249, %v214
        %v361 = vadd.f32 %v266, %v215
        %v362 = vadd.f32 %v252, %v216
        %v363 = vadd.f32 %v267, %v217
        %v364 = vadd.f32 %v255, %v218
        %v365 = vadd.f32 %v357, %v270
        %v366 = vadd.f32 %v358, %v289
        %v367 = vadd.f32 %v359, %v272
        %v368 = vadd.f32 %v360, %v290
        %v369 = vadd.f32 %v361, %v274
        %v370 = vadd.f32 %v362, %v291
        %v371 = vadd.f32 %v363, %v276
        %v372 = vadd.f32 %v364, %v292
        %v373 = vadd.f32 %v329, %v219
        %v374 = vadd.f32 %v311, %v220
        %v375 = vadd.f32 %v330, %v221
        %v376 = vadd.f32 %v314, %v222
        %v377 = vadd.f32 %v331, %v223
        %v378 = vadd.f32 %v317, %v224
        %v379 = vadd.f32 %v332, %v225
        %v380 = vadd.f32 %v320, %v226
        %v381 = vadd.f32 %v373, %v334
        %v382 = vadd.f32 %v374, %v353
        %v383 = vadd.f32 %v375, %v336
        %v384 = vadd.f32 %v376, %v354
        %v385 = vadd.f32 %v377, %v338
        %v386 = vadd.f32 %v378, %v355
        %v387 = vadd.f32 %v379, %v340
        %v388 = vadd.f32 %v380, %v356
        %v389 = vmul.f32 %v264, %v264
        %v390 = vmul.f32 %v246, %v246
        %v391 = vmul.f32 %v265, %v265
        %v392 = vmul.f32 %v249, %v249
        %v393 = vmul.f32 %v266, %v266
        %v394 = vmul.f32 %v252, %v252
        %v395 = vmul.f32 %v267, %v267
        %v396 = vmul.f32 %v255, %v255
        %v397 = vmul.f32 %v211, %v211
        %v398 = vmul.f32 %v212, %v212
        %v399 = vmul.f32 %v213, %v213
        %v400 = vmul.f32 %v214, %v214
        %v401 = vmul.f32 %v215, %v215
        %v402 = vmul.f32 %v216, %v216
        %v403 = vmul.f32 %v217, %v217
        %v404 = vmul.f32 %v218, %v218
        %v405 = vadd.f32 %v389, %v397
        %v406 = vadd.f32 %v390, %v398
        %v407 = vadd.f32 %v391, %v399
        %v408 = vadd.f32 %v392, %v400
        %v409 = vadd.f32 %v393, %v401
        %v410 = vadd.f32 %v394, %v402
        %v411 = vadd.f32 %v395, %v403
        %v412 = vadd.f32 %v396, %v404
        %v413 = vmul.f32 %v270, %v270
        %v414 = vmul.f32 %v289, %v289
        %v415 = vmul.f32 %v272, %v272
        %v416 = vmul.f32 %v290, %v290
        %v417 = vmul.f32 %v274, %v274
        %v418 = vmul.f32 %v291, %v291
        %v419 = vmul.f32 %v276, %v276
        %v420 = vmul.f32 %v292, %v292
        %v421 = vadd.f32 %v405, %v413
        %v422 = vadd.f32 %v406, %v414
        %v423 = vadd.f32 %v407, %v415
        %v424 = vadd.f32 %v408, %v416
        %v425 = vadd.f32 %v409, %v417
        %v426 = vadd.f32 %v410, %v418
        %v427 = vadd.f32 %v411, %v419
        %v428 = vadd.f32 %v412, %v420
        %v429 = vmul.f32 %v329, %v329
        %v430 = vmul.f32 %v311, %v311
        %v431 = vmul.f32 %v330, %v330
        %v432 = vmul.f32 %v314, %v314
        %v433 = vmul.f32 %v331, %v331
        %v434 = vmul.f32 %v317, %v317
        %v435 = vmul.f32 %v332, %v332
        %v436 = vmul.f32 %v320, %v320
        %v437 = vmul.f32 %v219, %v219
        %v438 = vmul.f32 %v220, %v220
        %v439 = vmul.f32 %v221, %v221
        %v440 = vmul.f32 %v222, %v222
        %v441 = vmul.f32 %v223, %v223
        %v442 = vmul.f32 %v224, %v224
        %v443 = vmul.f32 %v225, %v225
        %v444 = vmul.f32 %v226, %v226
        %v445 = vadd.f32 %v429, %v437
        %v446 = vadd.f32 %v430, %v438
        %v447 = vadd.f32 %v431, %v439
        %v448 = vadd.f32 %v432, %v440
        %v449 = vadd.f32 %v433, %v441
        %v450 = vadd.f32 %v434, %v442
        %v451 = vadd.f32 %v435, %v443
        %v452 = vadd.f32 %v436, %v444
        %v453 = vmul.f32 %v334, %v334
        %v454 = vmul.f32 %v353, %v353
        %v455 = vmul.f32 %v336, %v336
        %v456 = vmul.f32 %v354, %v354
        %v457 = vmul.f32 %v338, %v338
        %v458 = vmul.f32 %v355, %v355
        %v459 = vmul.f32 %v340, %v340
        %v460 = vmul.f32 %v356, %v356
        %v461 = vadd.f32 %v445, %v453
        %v462 = vadd.f32 %v446, %v454
        %v463 = vadd.f32 %v447, %v455
        %v464 = vadd.f32 %v448, %v456
        %v465 = vadd.f32 %v449, %v457
        %v466 = vadd.f32 %v450, %v458
        %v467 = vadd.f32 %v451, %v459
        %v468 = vadd.f32 %v452, %v460
        %v469 = vmul.f32 %v264, %v329
        %v470 = vmul.f32 %v246, %v311
        %v471 = vmul.f32 %v265, %v330
        %v472 = vmul.f32 %v249, %v314
        %v473 = vmul.f32 %v266, %v331
        %v474 = vmul.f32 %v252, %v317
        %v475 = vmul.f32 %v267, %v332
        %v476 = vmul.f32 %v255, %v320
        %v477 = vmul.f32 %v211, %v219
        %v478 = vmul.f32 %v212, %v220
        %v479 = vmul.f32 %v213, %v221
        %v480 = vmul.f32 %v214, %v222
        %v481 = vmul.f32 %v215, %v223
        %v482 = vmul.f32 %v216, %v224
        %v483 = vmul.f32 %v217, %v225
        %v484 = vmul.f32 %v218, %v226
        %v485 = vadd.f32 %v469, %v477
        %v486 = vadd.f32 %v470, %v478
        %v487 = vadd.f32 %v471, %v479
        %v488 = vadd.f32 %v472, %v480
        %v489 = vadd.f32 %v473, %v481
        %v490 = vadd.f32 %v474, %v482
        %v491 = vadd.f32 %v475, %v483
        %v492 = vadd.f32 %v476, %v484
        %v493 = vmul.f32 %v270, %v334
        %v494 = vmul.f32 %v289, %v353
        %v495 = vmul.f32 %v272, %v336
        %v496 = vmul.f32 %v290, %v354
        %v497 = vmul.f32 %v274, %v338
        %v498 = vmul.f32 %v291, %v355
        %v499 = vmul.f32 %v276, %v340
        %v500 = vmul.f32 %v292, %v356
        %v501 = vadd.f32 %v485, %v493
        %v502 = vadd.f32 %v486, %v494
        %v503 = vadd.f32 %v487, %v495
        %v504 = vadd.f32 %v488, %v496
        %v505 = vadd.f32 %v489, %v497
        %v506 = vadd.f32 %v490, %v498
        %v507 = vadd.f32 %v491, %v499
        %v508 = vadd.f32 %v492, %v500
        %517 = vrot.lane.b32.xlu0 %v365, 127
        %v518 = vpop.permute.xlu0 %517
        %519 = vrot.lane.b32.xlu0 %v366, 127
        %v520 = vpop.permute.xlu0 %519
        %521 = vrot.lane.b32.xlu0 %v367, 127
        %v522 = vpop.permute.xlu0 %521
        %523 = vrot.lane.b32.xlu0 %v368, 127
        %v524 = vpop.permute.xlu0 %523
        %525 = vrot.lane.b32.xlu0 %v369, 127
        %v526 = vpop.permute.xlu0 %525
        %527 = vrot.lane.b32.xlu0 %v370, 127
        %v528 = vpop.permute.xlu0 %527
        %529 = vrot.lane.b32.xlu0 %v371, 127
        %v530 = vpop.permute.xlu0 %529
        %531 = vrot.lane.b32.xlu0 %v372, 127
        %v532 = vpop.permute.xlu0 %531
        %541 = vrot.lane.b32.xlu0 %v365, 1
        %v542 = vpop.permute.xlu0 %541
        %543 = vrot.lane.b32.xlu0 %v366, 1
        %v544 = vpop.permute.xlu0 %543
        %545 = vrot.lane.b32.xlu0 %v367, 1
        %v546 = vpop.permute.xlu0 %545
        %547 = vrot.lane.b32.xlu0 %v368, 1
        %v548 = vpop.permute.xlu0 %547
        %549 = vrot.lane.b32.xlu0 %v369, 1
        %v550 = vpop.permute.xlu0 %549
        %551 = vrot.lane.b32.xlu0 %v370, 1
        %v552 = vpop.permute.xlu0 %551
        %553 = vrot.lane.b32.xlu0 %v371, 1
        %v554 = vpop.permute.xlu0 %553
        %555 = vrot.lane.b32.xlu0 %v372, 1
        %v556 = vpop.permute.xlu0 %555
        %vm565 = vcmask 7168
        %v566 = vsel %vm565, %v518, %v542
        %v567 = vsel %vm565, %v520, %v544
        %v568 = vsel %vm565, %v522, %v546
        %v569 = vsel %vm565, %v524, %v548
        %v570 = vsel %vm565, %v526, %v550
        %v571 = vsel %vm565, %v528, %v552
        %v572 = vsel %vm565, %v530, %v554
        %v573 = vsel %vm565, %v532, %v556
        %vm574 = vcmask 121856
        %v575 = vsel %vm574, %v518, %v542
        %v576 = vsel %vm574, %v520, %v544
        %v577 = vsel %vm574, %v522, %v546
        %v578 = vsel %vm574, %v524, %v548
        %v579 = vsel %vm574, %v526, %v550
        %v580 = vsel %vm574, %v528, %v552
        %v581 = vsel %vm574, %v530, %v554
        %v582 = vsel %vm574, %v532, %v556
        %v583 = vadd.f32 %v566, %v365
        %v584 = vadd.f32 %v567, %v366
        %v585 = vadd.f32 %v568, %v367
        %v586 = vadd.f32 %v569, %v368
        %v587 = vadd.f32 %v570, %v369
        %v588 = vadd.f32 %v571, %v370
        %v589 = vadd.f32 %v572, %v371
        %v590 = vadd.f32 %v573, %v372
        %v591 = vadd.f32 %v583, %v575
        %v592 = vadd.f32 %v584, %v576
        %v593 = vadd.f32 %v585, %v577
        %v594 = vadd.f32 %v586, %v578
        %v595 = vadd.f32 %v587, %v579
        %v596 = vadd.f32 %v588, %v580
        %v597 = vadd.f32 %v589, %v581
        %v598 = vadd.f32 %v590, %v582
        %v599 = vmul.f32 %v591, 0.11111111
        %v600 = vmul.f32 %v592, 0.11111111
        %v601 = vmul.f32 %v593, 0.11111111
        %v602 = vmul.f32 %v594, 0.11111111
        %v603 = vmul.f32 %v595, 0.11111111
        %v604 = vmul.f32 %v596, 0.11111111
        %v605 = vmul.f32 %v597, 0.11111111
        %v606 = vmul.f32 %v598, 0.11111111
        %615 = vrot.lane.b32.xlu0 %v381, 127
        %v616 = vpop.permute.xlu0 %615
        %617 = vrot.lane.b32.xlu0 %v382, 127
        %v618 = vpop.permute.xlu0 %617
        %619 = vrot.lane.b32.xlu0 %v383, 127
        %v620 = vpop.permute.xlu0 %619
        %621 = vrot.lane.b32.xlu0 %v384, 127
        %v622 = vpop.permute.xlu0 %621
        %623 = vrot.lane.b32.xlu0 %v385, 127
        %v624 = vpop.permute.xlu0 %623
        %625 = vrot.lane.b32.xlu0 %v386, 127
        %v626 = vpop.permute.xlu0 %625
        %627 = vrot.lane.b32.xlu0 %v387, 127
        %v628 = vpop.permute.xlu0 %627
        %629 = vrot.lane.b32.xlu0 %v388, 127
        %v630 = vpop.permute.xlu0 %629
        %639 = vrot.lane.b32.xlu0 %v381, 1
        %v640 = vpop.permute.xlu0 %639
        %641 = vrot.lane.b32.xlu0 %v382, 1
        %v642 = vpop.permute.xlu0 %641
        %643 = vrot.lane.b32.xlu0 %v383, 1
        %v644 = vpop.permute.xlu0 %643
        %645 = vrot.lane.b32.xlu0 %v384, 1
        %v646 = vpop.permute.xlu0 %645
        %647 = vrot.lane.b32.xlu0 %v385, 1
        %v648 = vpop.permute.xlu0 %647
        %649 = vrot.lane.b32.xlu0 %v386, 1
        %v650 = vpop.permute.xlu0 %649
        %651 = vrot.lane.b32.xlu0 %v387, 1
        %v652 = vpop.permute.xlu0 %651
        %653 = vrot.lane.b32.xlu0 %v388, 1
        %v654 = vpop.permute.xlu0 %653
        %v663 = vsel %vm565, %v616, %v640
        %v664 = vsel %vm565, %v618, %v642
        %v665 = vsel %vm565, %v620, %v644
        %v666 = vsel %vm565, %v622, %v646
        %v667 = vsel %vm565, %v624, %v648
        %v668 = vsel %vm565, %v626, %v650
        %v669 = vsel %vm565, %v628, %v652
        %v670 = vsel %vm565, %v630, %v654
        %v671 = vsel %vm574, %v616, %v640
        %v672 = vsel %vm574, %v618, %v642
        %v673 = vsel %vm574, %v620, %v644
        %v674 = vsel %vm574, %v622, %v646
        %v675 = vsel %vm574, %v624, %v648
        %v676 = vsel %vm574, %v626, %v650
        %v677 = vsel %vm574, %v628, %v652
        %v678 = vsel %vm574, %v630, %v654
        %v679 = vadd.f32 %v663, %v381
        %v680 = vadd.f32 %v664, %v382
        %v681 = vadd.f32 %v665, %v383
        %v682 = vadd.f32 %v666, %v384
        %v683 = vadd.f32 %v667, %v385
        %v684 = vadd.f32 %v668, %v386
        %v685 = vadd.f32 %v669, %v387
        %v686 = vadd.f32 %v670, %v388
        %v687 = vadd.f32 %v679, %v671
        %v688 = vadd.f32 %v680, %v672
        %v689 = vadd.f32 %v681, %v673
        %v690 = vadd.f32 %v682, %v674
        %v691 = vadd.f32 %v683, %v675
        %v692 = vadd.f32 %v684, %v676
        %v693 = vadd.f32 %v685, %v677
        %v694 = vadd.f32 %v686, %v678
        %v695 = vmul.f32 %v687, 0.11111111
        %v696 = vmul.f32 %v688, 0.11111111
        %v697 = vmul.f32 %v689, 0.11111111
        %v698 = vmul.f32 %v690, 0.11111111
        %v699 = vmul.f32 %v691, 0.11111111
        %v700 = vmul.f32 %v692, 0.11111111
        %v701 = vmul.f32 %v693, 0.11111111
        %v702 = vmul.f32 %v694, 0.11111111
        %711 = vrot.lane.b32.xlu0 %v421, 127
        %v712 = vpop.permute.xlu0 %711
        %713 = vrot.lane.b32.xlu0 %v422, 127
        %v714 = vpop.permute.xlu0 %713
        %715 = vrot.lane.b32.xlu0 %v423, 127
        %v716 = vpop.permute.xlu0 %715
        %717 = vrot.lane.b32.xlu0 %v424, 127
        %v718 = vpop.permute.xlu0 %717
        %719 = vrot.lane.b32.xlu0 %v425, 127
        %v720 = vpop.permute.xlu0 %719
        %721 = vrot.lane.b32.xlu0 %v426, 127
        %v722 = vpop.permute.xlu0 %721
        %723 = vrot.lane.b32.xlu0 %v427, 127
        %v724 = vpop.permute.xlu0 %723
        %725 = vrot.lane.b32.xlu0 %v428, 127
        %v726 = vpop.permute.xlu0 %725
        %735 = vrot.lane.b32.xlu0 %v421, 1
        %v736 = vpop.permute.xlu0 %735
        %737 = vrot.lane.b32.xlu0 %v422, 1
        %v738 = vpop.permute.xlu0 %737
        %739 = vrot.lane.b32.xlu0 %v423, 1
        %v740 = vpop.permute.xlu0 %739
        %741 = vrot.lane.b32.xlu0 %v424, 1
        %v742 = vpop.permute.xlu0 %741
        %743 = vrot.lane.b32.xlu0 %v425, 1
        %v744 = vpop.permute.xlu0 %743
        %745 = vrot.lane.b32.xlu0 %v426, 1
        %v746 = vpop.permute.xlu0 %745
        %747 = vrot.lane.b32.xlu0 %v427, 1
        %v748 = vpop.permute.xlu0 %747
        %749 = vrot.lane.b32.xlu0 %v428, 1
        %v750 = vpop.permute.xlu0 %749
        %v759 = vsel %vm565, %v712, %v736
        %v760 = vsel %vm565, %v714, %v738
        %v761 = vsel %vm565, %v716, %v740
        %v762 = vsel %vm565, %v718, %v742
        %v763 = vsel %vm565, %v720, %v744
        %v764 = vsel %vm565, %v722, %v746
        %v765 = vsel %vm565, %v724, %v748
        %v766 = vsel %vm565, %v726, %v750
        %v767 = vsel %vm574, %v712, %v736
        %v768 = vsel %vm574, %v714, %v738
        %v769 = vsel %vm574, %v716, %v740
        %v770 = vsel %vm574, %v718, %v742
        %v771 = vsel %vm574, %v720, %v744
        %v772 = vsel %vm574, %v722, %v746
        %v773 = vsel %vm574, %v724, %v748
        %v774 = vsel %vm574, %v726, %v750
        %v775 = vadd.f32 %v759, %v421
        %v776 = vadd.f32 %v760, %v422
        %v777 = vadd.f32 %v761, %v423
        %v778 = vadd.f32 %v762, %v424
        %v779 = vadd.f32 %v763, %v425
        %v780 = vadd.f32 %v764, %v426
        %v781 = vadd.f32 %v765, %v427
        %v782 = vadd.f32 %v766, %v428
        %v783 = vadd.f32 %v775, %v767
        %v784 = vadd.f32 %v776, %v768
        %v785 = vadd.f32 %v777, %v769
        %v786 = vadd.f32 %v778, %v770
        %v787 = vadd.f32 %v779, %v771
        %v788 = vadd.f32 %v780, %v772
        %v789 = vadd.f32 %v781, %v773
        %v790 = vadd.f32 %v782, %v774
        %v791 = vmul.f32 %v783, 0.11111111
        %v792 = vmul.f32 %v784, 0.11111111
        %v793 = vmul.f32 %v785, 0.11111111
        %v794 = vmul.f32 %v786, 0.11111111
        %v795 = vmul.f32 %v787, 0.11111111
        %v796 = vmul.f32 %v788, 0.11111111
        %v797 = vmul.f32 %v789, 0.11111111
        %v798 = vmul.f32 %v790, 0.11111111
        %807 = vrot.lane.b32.xlu0 %v461, 127
        %v808 = vpop.permute.xlu0 %807
        %809 = vrot.lane.b32.xlu0 %v462, 127
        %v810 = vpop.permute.xlu0 %809
        %811 = vrot.lane.b32.xlu0 %v463, 127
        %v812 = vpop.permute.xlu0 %811
        %813 = vrot.lane.b32.xlu0 %v464, 127
        %v814 = vpop.permute.xlu0 %813
        %815 = vrot.lane.b32.xlu0 %v465, 127
        %v816 = vpop.permute.xlu0 %815
        %817 = vrot.lane.b32.xlu0 %v466, 127
        %v818 = vpop.permute.xlu0 %817
        %819 = vrot.lane.b32.xlu0 %v467, 127
        %v820 = vpop.permute.xlu0 %819
        %821 = vrot.lane.b32.xlu0 %v468, 127
        %v822 = vpop.permute.xlu0 %821
        %831 = vrot.lane.b32.xlu0 %v461, 1
        %v832 = vpop.permute.xlu0 %831
        %833 = vrot.lane.b32.xlu0 %v462, 1
        %v834 = vpop.permute.xlu0 %833
        %835 = vrot.lane.b32.xlu0 %v463, 1
        %v836 = vpop.permute.xlu0 %835
        %837 = vrot.lane.b32.xlu0 %v464, 1
        %v838 = vpop.permute.xlu0 %837
        %839 = vrot.lane.b32.xlu0 %v465, 1
        %v840 = vpop.permute.xlu0 %839
        %841 = vrot.lane.b32.xlu0 %v466, 1
        %v842 = vpop.permute.xlu0 %841
        %843 = vrot.lane.b32.xlu0 %v467, 1
        %v844 = vpop.permute.xlu0 %843
        %845 = vrot.lane.b32.xlu0 %v468, 1
        %v846 = vpop.permute.xlu0 %845
        %v855 = vsel %vm565, %v808, %v832
        %v856 = vsel %vm565, %v810, %v834
        %v857 = vsel %vm565, %v812, %v836
        %v858 = vsel %vm565, %v814, %v838
        %v859 = vsel %vm565, %v816, %v840
        %v860 = vsel %vm565, %v818, %v842
        %v861 = vsel %vm565, %v820, %v844
        %v862 = vsel %vm565, %v822, %v846
        %v863 = vsel %vm574, %v808, %v832
        %v864 = vsel %vm574, %v810, %v834
        %v865 = vsel %vm574, %v812, %v836
        %v866 = vsel %vm574, %v814, %v838
        %v867 = vsel %vm574, %v816, %v840
        %v868 = vsel %vm574, %v818, %v842
        %v869 = vsel %vm574, %v820, %v844
        %v870 = vsel %vm574, %v822, %v846
        %v871 = vadd.f32 %v855, %v461
        %v872 = vadd.f32 %v856, %v462
        %v873 = vadd.f32 %v857, %v463
        %v874 = vadd.f32 %v858, %v464
        %v875 = vadd.f32 %v859, %v465
        %v876 = vadd.f32 %v860, %v466
        %v877 = vadd.f32 %v861, %v467
        %v878 = vadd.f32 %v862, %v468
        %v879 = vadd.f32 %v871, %v863
        %v880 = vadd.f32 %v872, %v864
        %v881 = vadd.f32 %v873, %v865
        %v882 = vadd.f32 %v874, %v866
        %v883 = vadd.f32 %v875, %v867
        %v884 = vadd.f32 %v876, %v868
        %v885 = vadd.f32 %v877, %v869
        %v886 = vadd.f32 %v878, %v870
        %v887 = vmul.f32 %v879, 0.11111111
        %v888 = vmul.f32 %v880, 0.11111111
        %v889 = vmul.f32 %v881, 0.11111111
        %v890 = vmul.f32 %v882, 0.11111111
        %v891 = vmul.f32 %v883, 0.11111111
        %v892 = vmul.f32 %v884, 0.11111111
        %v893 = vmul.f32 %v885, 0.11111111
        %v894 = vmul.f32 %v886, 0.11111111
        %903 = vrot.lane.b32.xlu0 %v501, 127
        %v904 = vpop.permute.xlu0 %903
        %905 = vrot.lane.b32.xlu0 %v502, 127
        %v906 = vpop.permute.xlu0 %905
        %907 = vrot.lane.b32.xlu0 %v503, 127
        %v908 = vpop.permute.xlu0 %907
        %909 = vrot.lane.b32.xlu0 %v504, 127
        %v910 = vpop.permute.xlu0 %909
        %911 = vrot.lane.b32.xlu0 %v505, 127
        %v912 = vpop.permute.xlu0 %911
        %913 = vrot.lane.b32.xlu0 %v506, 127
        %v914 = vpop.permute.xlu0 %913
        %915 = vrot.lane.b32.xlu0 %v507, 127
        %v916 = vpop.permute.xlu0 %915
        %917 = vrot.lane.b32.xlu0 %v508, 127
        %v918 = vpop.permute.xlu0 %917
        %927 = vrot.lane.b32.xlu0 %v501, 1
        %v928 = vpop.permute.xlu0 %927
        %929 = vrot.lane.b32.xlu0 %v502, 1
        %v930 = vpop.permute.xlu0 %929
        %931 = vrot.lane.b32.xlu0 %v503, 1
        %v932 = vpop.permute.xlu0 %931
        %933 = vrot.lane.b32.xlu0 %v504, 1
        %v934 = vpop.permute.xlu0 %933
        %935 = vrot.lane.b32.xlu0 %v505, 1
        %v936 = vpop.permute.xlu0 %935
        %937 = vrot.lane.b32.xlu0 %v506, 1
        %v938 = vpop.permute.xlu0 %937
        %939 = vrot.lane.b32.xlu0 %v507, 1
        %v940 = vpop.permute.xlu0 %939
        %941 = vrot.lane.b32.xlu0 %v508, 1
        %v942 = vpop.permute.xlu0 %941
        %v951 = vsel %vm565, %v904, %v928
        %v952 = vsel %vm565, %v906, %v930
        %v953 = vsel %vm565, %v908, %v932
        %v954 = vsel %vm565, %v910, %v934
        %v955 = vsel %vm565, %v912, %v936
        %v956 = vsel %vm565, %v914, %v938
        %v957 = vsel %vm565, %v916, %v940
        %v958 = vsel %vm565, %v918, %v942
        %v959 = vsel %vm574, %v904, %v928
        %v960 = vsel %vm574, %v906, %v930
        %v961 = vsel %vm574, %v908, %v932
        %v962 = vsel %vm574, %v910, %v934
        %v963 = vsel %vm574, %v912, %v936
        %v964 = vsel %vm574, %v914, %v938
        %v965 = vsel %vm574, %v916, %v940
        %v966 = vsel %vm574, %v918, %v942
        %v967 = vadd.f32 %v951, %v501
        %v968 = vadd.f32 %v952, %v502
        %v969 = vadd.f32 %v953, %v503
        %v970 = vadd.f32 %v954, %v504
        %v971 = vadd.f32 %v955, %v505
        %v972 = vadd.f32 %v956, %v506
        %v973 = vadd.f32 %v957, %v507
        %v974 = vadd.f32 %v958, %v508
        %v975 = vadd.f32 %v967, %v959
        %v976 = vadd.f32 %v968, %v960
        %v977 = vadd.f32 %v969, %v961
        %v978 = vadd.f32 %v970, %v962
        %v979 = vadd.f32 %v971, %v963
        %v980 = vadd.f32 %v972, %v964
        %v981 = vadd.f32 %v973, %v965
        %v982 = vadd.f32 %v974, %v966
        %v983 = vmul.f32 %v975, 0.11111111
        %v984 = vmul.f32 %v976, 0.11111111
        %v985 = vmul.f32 %v977, 0.11111111
        %v986 = vmul.f32 %v978, 0.11111111
        %v987 = vmul.f32 %v979, 0.11111111
        %v988 = vmul.f32 %v980, 0.11111111
        %v989 = vmul.f32 %v981, 0.11111111
        %v990 = vmul.f32 %v982, 0.11111111
        %v991 = vmul.f32 %v599, %v599
        %v992 = vmul.f32 %v600, %v600
        %v993 = vmul.f32 %v601, %v601
        %v994 = vmul.f32 %v602, %v602
        %v995 = vmul.f32 %v603, %v603
        %v996 = vmul.f32 %v604, %v604
        %v997 = vmul.f32 %v605, %v605
        %v998 = vmul.f32 %v606, %v606
        %v999 = vsub.f32 %v791, %v991
        %v1000 = vsub.f32 %v792, %v992
        %v1001 = vsub.f32 %v793, %v993
        %v1002 = vsub.f32 %v794, %v994
        %v1003 = vsub.f32 %v795, %v995
        %v1004 = vsub.f32 %v796, %v996
        %v1005 = vsub.f32 %v797, %v997
        %v1006 = vsub.f32 %v798, %v998
        %v1007 = vmul.f32 %v695, %v695
        %v1008 = vmul.f32 %v696, %v696
        %v1009 = vmul.f32 %v697, %v697
        %v1010 = vmul.f32 %v698, %v698
        %v1011 = vmul.f32 %v699, %v699
        %v1012 = vmul.f32 %v700, %v700
        %v1013 = vmul.f32 %v701, %v701
        %v1014 = vmul.f32 %v702, %v702
        %v1015 = vsub.f32 %v887, %v1007
        %v1016 = vsub.f32 %v888, %v1008
        %v1017 = vsub.f32 %v889, %v1009
        %v1018 = vsub.f32 %v890, %v1010
        %v1019 = vsub.f32 %v891, %v1011
        %v1020 = vsub.f32 %v892, %v1012
        %v1021 = vsub.f32 %v893, %v1013
        %v1022 = vsub.f32 %v894, %v1014
        %v1023 = vmul.f32 %v599, %v695
        %v1024 = vmul.f32 %v600, %v696
        %v1025 = vmul.f32 %v601, %v697
        %v1026 = vmul.f32 %v602, %v698
        %v1027 = vmul.f32 %v603, %v699
        %v1028 = vmul.f32 %v604, %v700
        %v1029 = vmul.f32 %v605, %v701
        %v1030 = vmul.f32 %v606, %v702
        %v1031 = vsub.f32 %v983, %v1023
        %v1032 = vsub.f32 %v984, %v1024
        %v1033 = vsub.f32 %v985, %v1025
        %v1034 = vsub.f32 %v986, %v1026
        %v1035 = vsub.f32 %v987, %v1027
        %v1036 = vsub.f32 %v988, %v1028
        %v1037 = vsub.f32 %v989, %v1029
        %v1038 = vsub.f32 %v990, %v1030
        %v1039 = vmul.f32 %v599, 2.0
        %v1040 = vmul.f32 %v600, 2.0
        %v1041 = vmul.f32 %v601, 2.0
        %v1042 = vmul.f32 %v602, 2.0
        %v1043 = vmul.f32 %v603, 2.0
        %v1044 = vmul.f32 %v604, 2.0
        %v1045 = vmul.f32 %v605, 2.0
        %v1046 = vmul.f32 %v606, 2.0
        %v1047 = vmul.f32 %v1039, %v695
        %v1048 = vmul.f32 %v1040, %v696
        %v1049 = vmul.f32 %v1041, %v697
        %v1050 = vmul.f32 %v1042, %v698
        %v1051 = vmul.f32 %v1043, %v699
        %v1052 = vmul.f32 %v1044, %v700
        %v1053 = vmul.f32 %v1045, %v701
        %v1054 = vmul.f32 %v1046, %v702
        %v1055 = vadd.f32 %v1047, 0.0001
        %v1056 = vadd.f32 %v1048, 0.0001
        %v1057 = vadd.f32 %v1049, 0.0001
        %v1058 = vadd.f32 %v1050, 0.0001
        %v1059 = vadd.f32 %v1051, 0.0001
        %v1060 = vadd.f32 %v1052, 0.0001
        %v1061 = vadd.f32 %v1053, 0.0001
        %v1062 = vadd.f32 %v1054, 0.0001
        %v1063 = vmul.f32 %v1031, 2.0
        %v1064 = vmul.f32 %v1032, 2.0
        %v1065 = vmul.f32 %v1033, 2.0
        %v1066 = vmul.f32 %v1034, 2.0
        %v1067 = vmul.f32 %v1035, 2.0
        %v1068 = vmul.f32 %v1036, 2.0
        %v1069 = vmul.f32 %v1037, 2.0
        %v1070 = vmul.f32 %v1038, 2.0
        %v1071 = vadd.f32 %v1063, 0.0009
        %v1072 = vadd.f32 %v1064, 0.0009
        %v1073 = vadd.f32 %v1065, 0.0009
        %v1074 = vadd.f32 %v1066, 0.0009
        %v1075 = vadd.f32 %v1067, 0.0009
        %v1076 = vadd.f32 %v1068, 0.0009
        %v1077 = vadd.f32 %v1069, 0.0009
        %v1078 = vadd.f32 %v1070, 0.0009
        %v1079 = vmul.f32 %v1055, %v1071
        %v1080 = vmul.f32 %v1056, %v1072
        %v1081 = vmul.f32 %v1057, %v1073
        %v1082 = vmul.f32 %v1058, %v1074
        %v1083 = vmul.f32 %v1059, %v1075
        %v1084 = vmul.f32 %v1060, %v1076
        %v1085 = vmul.f32 %v1061, %v1077
        %v1086 = vmul.f32 %v1062, %v1078
        %v1087 = vadd.f32 %v991, %v1007
        %v1088 = vadd.f32 %v992, %v1008
        %v1089 = vadd.f32 %v993, %v1009
        %v1090 = vadd.f32 %v994, %v1010
        %v1091 = vadd.f32 %v995, %v1011
        %v1092 = vadd.f32 %v996, %v1012
        %v1093 = vadd.f32 %v997, %v1013
        %v1094 = vadd.f32 %v998, %v1014
        %v1095 = vadd.f32 %v1087, 0.0001
        %v1096 = vadd.f32 %v1088, 0.0001
        %v1097 = vadd.f32 %v1089, 0.0001
        %v1098 = vadd.f32 %v1090, 0.0001
        %v1099 = vadd.f32 %v1091, 0.0001
        %v1100 = vadd.f32 %v1092, 0.0001
        %v1101 = vadd.f32 %v1093, 0.0001
        %v1102 = vadd.f32 %v1094, 0.0001
        %v1103 = vadd.f32 %v999, %v1015
        %v1104 = vadd.f32 %v1000, %v1016
        %v1105 = vadd.f32 %v1001, %v1017
        %v1106 = vadd.f32 %v1002, %v1018
        %v1107 = vadd.f32 %v1003, %v1019
        %v1108 = vadd.f32 %v1004, %v1020
        %v1109 = vadd.f32 %v1005, %v1021
        %v1110 = vadd.f32 %v1006, %v1022
        %v1111 = vadd.f32 %v1103, 0.0009
        %v1112 = vadd.f32 %v1104, 0.0009
        %v1113 = vadd.f32 %v1105, 0.0009
        %v1114 = vadd.f32 %v1106, 0.0009
        %v1115 = vadd.f32 %v1107, 0.0009
        %v1116 = vadd.f32 %v1108, 0.0009
        %v1117 = vadd.f32 %v1109, 0.0009
        %v1118 = vadd.f32 %v1110, 0.0009
        %v1119 = vmul.f32 %v1095, %v1111
        %v1120 = vmul.f32 %v1096, %v1112
        %v1121 = vmul.f32 %v1097, %v1113
        %v1122 = vmul.f32 %v1098, %v1114
        %v1123 = vmul.f32 %v1099, %v1115
        %v1124 = vmul.f32 %v1100, %v1116
        %v1125 = vmul.f32 %v1101, %v1117
        %v1126 = vmul.f32 %v1102, %v1118
        %v1127 = vrcp.pop %v1119
        %v1128 = vrcp.pop %v1120
        %v1129 = vrcp.pop %v1121
        %v1130 = vrcp.pop %v1122
        %v1131 = vrcp.pop %v1123
        %v1132 = vrcp.pop %v1124
        %v1133 = vrcp.pop %v1125
        %v1134 = vrcp.pop %v1126
        %v1135 = vmul.f32 %v1119, %v1127
        %v1136 = vmul.f32 %v1120, %v1128
        %v1137 = vmul.f32 %v1121, %v1129
        %v1138 = vmul.f32 %v1122, %v1130
        %v1139 = vmul.f32 %v1123, %v1131
        %v1140 = vmul.f32 %v1124, %v1132
        %v1141 = vmul.f32 %v1125, %v1133
        %v1142 = vmul.f32 %v1126, %v1134
        %v1143 = vsub.f32 2.0, %v1135
        %v1144 = vsub.f32 2.0, %v1136
        %v1145 = vsub.f32 2.0, %v1137
        %v1146 = vsub.f32 2.0, %v1138
        %v1147 = vsub.f32 2.0, %v1139
        %v1148 = vsub.f32 2.0, %v1140
        %v1149 = vsub.f32 2.0, %v1141
        %v1150 = vsub.f32 2.0, %v1142
        %v1151 = vmul.f32 %v1127, %v1143
        %v1152 = vmul.f32 %v1128, %v1144
        %v1153 = vmul.f32 %v1129, %v1145
        %v1154 = vmul.f32 %v1130, %v1146
        %v1155 = vmul.f32 %v1131, %v1147
        %v1156 = vmul.f32 %v1132, %v1148
        %v1157 = vmul.f32 %v1133, %v1149
        %v1158 = vmul.f32 %v1134, %v1150
        %v1159 = vmul.f32 %v1079, %v1151
        %v1160 = vmul.f32 %v1080, %v1152
        %v1161 = vmul.f32 %v1081, %v1153
        %v1162 = vmul.f32 %v1082, %v1154
        %v1163 = vmul.f32 %v1083, %v1155
        %v1164 = vmul.f32 %v1084, %v1156
        %v1165 = vmul.f32 %v1085, %v1157
        %v1166 = vmul.f32 %v1086, %v1158
        %v1167 = vsub.f32 1.0, %v1159
        %v1168 = vsub.f32 1.0, %v1160
        %v1169 = vsub.f32 1.0, %v1161
        %v1170 = vsub.f32 1.0, %v1162
        %v1171 = vsub.f32 1.0, %v1163
        %v1172 = vsub.f32 1.0, %v1164
        %v1173 = vsub.f32 1.0, %v1165
        %v1174 = vsub.f32 1.0, %v1166
        %v1175 = vmul.f32 %v1167, 0.5
        %v1176 = vmul.f32 %v1168, 0.5
        %v1177 = vmul.f32 %v1169, 0.5
        %v1178 = vmul.f32 %v1170, 0.5
        %v1179 = vmul.f32 %v1171, 0.5
        %v1180 = vmul.f32 %v1172, 0.5
        %v1181 = vmul.f32 %v1173, 0.5
        %v1182 = vmul.f32 %v1174, 0.5
        %v1183 = vmax.f32 %v1175, 0.0
        %v1184 = vmax.f32 %v1176, 0.0
        %v1185 = vmax.f32 %v1177, 0.0
        %v1186 = vmax.f32 %v1178, 0.0
        %v1187 = vmax.f32 %v1179, 0.0
        %v1188 = vmax.f32 %v1180, 0.0
        %v1189 = vmax.f32 %v1181, 0.0
        %v1190 = vmax.f32 %v1182, 0.0
        %v1191 = vmin.f32 %v1183, 1.0
        %v1192 = vmin.f32 %v1184, 1.0
        %v1193 = vmin.f32 %v1185, 1.0
        %v1194 = vmin.f32 %v1186, 1.0
        %v1195 = vmin.f32 %v1187, 1.0
        %v1196 = vmin.f32 %v1188, 1.0
        %v1197 = vmin.f32 %v1189, 1.0
        %v1198 = vmin.f32 %v1190, 1.0
        %vm1199 = vcmask 130048
        %1200 = vst.msk [vmem:[%s207] sm:$0xff] %vm1199, %v1191
        %1201 = vst.msk [vmem:[%s207 + $0x8] sm:$0xff] %vm1199, %v1192
        %1202 = vst.msk [vmem:[%s207 + $0x10] sm:$0xff] %vm1199, %v1193
        %1203 = vst.msk [vmem:[%s207 + $0x18] sm:$0xff] %vm1199, %v1194
        %1204 = vst.msk [vmem:[%s207 + $0x20] sm:$0xff] %vm1199, %v1195
        %1205 = vst.msk [vmem:[%s207 + $0x28] sm:$0xff] %vm1199, %v1196
        %1206 = vst.msk [vmem:[%s207 + $0x30] sm:$0xff] %vm1199, %v1197
        %1207 = vst.msk [vmem:[%s207 + $0x38] sm:$0xff] %vm1199, %v1198
        %s1208 = sand.u32 %s82, 1
        %s1209 = scalar_lea.sflag [#allocation4], %s1208
        %s1210 = sand.u32 %s82, 1
        %s1211 = smul.addr %s1210, 64
        %s1212 = scalar_lea.vmem [#allocation7], %s1211
        // Predicated region
        $region37: #{tpu_custom_call.1} parent=27 // pred_check
          %p1213 = pneg %p92
        $region38: #{tpu_custom_call.1} parent=27 // pred_check_branch
          %1215 = sbr.rel (%p1213) target = $region40
        $region39: #{tpu_custom_call.1} parent=27 // pred_region
          %s1216 = smul.u32 4, %s22
          %1218 = vsyncadd %s1209, 0
          %s1219 = smul.addr %s1216, 2
          %s1220 = smul.addr %s1219, 8
          %s1221 = scalar_lea.hbm %s2, %s1220
          %s1222 = sshll.u32 %s1212, 4
          %s1223 = int_to_ptr.vmem [resolvable:$true] %s1222
          %s1224 = sshll.u32 %s1221, 4
          %s1225 = int_to_ptr.hbm [resolvable:$true] %s1224
          %1230 = dma.vmem_to_hbm [thread:$0]  %s1223, 1024, %s1225, %s1209, 128, 128, 8
        $region40: #{tpu_custom_call.1} parent=27 // pred_fallthru
          _
      $region28: #{tpu_custom_call.1} parent=5 // pred_fallthru
        _
      %p1231 = scmp.le.s32.totalorder 2, %s17
      // Predicated region
      $region41: #{tpu_custom_call.1} parent=5 // pred_check
        %p1232 = pneg %p1231
      $region42: #{tpu_custom_call.1} parent=5 // pred_check_branch
        %1234 = sbr.rel (%p1232) target = $region44
      $region43: #{tpu_custom_call.1} parent=5 // pred_region
        %s1235 = ssub.s32 %s17, 2
        // Predicated region
        $region45: #{tpu_custom_call.1} parent=43 // pred_check
          %p1236 = pneg %p98
        $region46: #{tpu_custom_call.1} parent=43 // pred_check_branch
          %1238 = sbr.rel (%p1236) target = $region48
        $region47: #{tpu_custom_call.1} parent=43 // pred_region
          %s1239 = sand.u32 %s83, 1
          %s1240 = scalar_lea.sflag [#allocation4], %s1239
          %s1241 = sand.u32 %s83, 1
          %s1242 = smul.addr %s1241, 64
          %s1243 = scalar_lea.vmem [#allocation7], %s1242
          %1245 = dma.done %s1240, 1024
        $region48: #{tpu_custom_call.1} parent=43 // pred_fallthru
          _
      $region44: #{tpu_custom_call.1} parent=5 // pred_fallthru
        _
    $region6: #{tpu_custom_call.1} parent=1 // loop_footer
      %s21 = sadd.s32 1, %s17
    $region7: #{tpu_custom_call.1} parent=1 // loop_footer_branch
      %16 = sbr.rel target = $region3
    $region8: #{tpu_custom_call.1} parent=1 // loop_exit
      _
    %1246 = vsyncpa [#allocation3], 1
    %s1247 = scalar_lea.sflag [#allocation3], 1
    %1248 = vsyncpa %s1247, 1
    %1249 = vsyncpa [#allocation6], 1
    %s1250 = scalar_lea.sflag [#allocation6], 1
    %1251 = vsyncpa %s1250, 1
    %1252 = vsyncpa [#allocation4], 1
    %s1253 = scalar_lea.sflag [#allocation4], 1
    %1254 = vsyncpa %s1253, 1

</llo_original>
